<compile_context>
chip_gen: v7x
topology: tpu7x:2x2x1
jax: 0.10.0
libtpu: 0.0.40
codegen_flags: <defaults>
</compile_context>

<pallas_src>
import numpy as np
import jax
import jax.numpy as jnp
from jax.experimental import pallas as pl
from jax.experimental.pallas import tpu as pltpu

OUT_LANES = 8  # narrow head-output width; only column 0 is the real sigmoid out


def _analogy_kernel(x1_ref, x2_ref, x3_ref, x4_ref,
                    w_in_ref, b_in_ref, wd_ref, bd_ref, wo_ref, bo_ref,
                    h_ref, out_ref):
    """One batch tile: blockdiag(il1..il4)+ReLU -> fl+ReLU -> fc_out+Sigmoid."""
    size = x1_ref.shape[1]
    x_refs = (x1_ref, x2_ref, x3_ref, x4_ref)

    # Input layers il1..il4: w_in is block-diagonal, so the i-th partial dot
    # contributes only to lanes [i*H1, (i+1)*H1); summing the four partial
    # dots yields the packed (h1|h2|h3|h4) slab without any lane concat.
    h = jnp.dot(x_refs[0][...].astype(jnp.bfloat16), w_in_ref[0:size, :],
                preferred_element_type=jnp.float32)
    for i in range(1, 4):
        h = h + jnp.dot(x_refs[i][...].astype(jnp.bfloat16),
                        w_in_ref[i * size:(i + 1) * size, :],
                        preferred_element_type=jnp.float32)
    h = jnp.maximum(h + b_in_ref[...], 0.0)
    h_bf16 = h.astype(jnp.bfloat16)
    h_ref[...] = h_bf16                      # bf16 writeback (halves HBM bytes)

    # Decision layer fl: cat(h1..h4) @ Wd + bd, ReLU  (h IS the concat already)
    d = jnp.dot(h_bf16, wd_ref[...], preferred_element_type=jnp.float32)
    d = jnp.maximum(d + bd_ref[...], 0.0)

    # fc_out: Linear(H2 -> 1) + Sigmoid; head zero-padded only to OUT_LANES.
    z = jnp.dot(d.astype(jnp.bfloat16), wo_ref[...],
                preferred_element_type=jnp.float32) + bo_ref[...]
    out_ref[...] = pl.reciprocal(1.0 + jnp.exp(-z), approx=True)   # sigmoid


def pack_params(params):
    """One-time (outside the hot path) repacking of the nn.Linear params."""
    size = params["w1"].shape[0]
    h1 = params["w1"].shape[1]
    h2 = params["wd"].shape[1]

    w_in = jnp.zeros((4 * size, 4 * h1), jnp.float32)
    for i in range(4):
        w_in = w_in.at[i * size:(i + 1) * size, i * h1:(i + 1) * h1].set(
            params[f"w{i + 1}"])
    b_in = jnp.concatenate([params[f"b{i + 1}"] for i in range(4)], axis=1)

    wo_pad = jnp.zeros((h2, OUT_LANES), jnp.float32).at[:, :1].set(params["wo"])
    bo_pad = jnp.zeros((1, OUT_LANES), jnp.float32).at[:, :1].set(params["bo"])

    return {
        "w_in": w_in.astype(jnp.bfloat16),
        "b_in": b_in.astype(jnp.float32),
        "wd": params["wd"].astype(jnp.bfloat16),
        "bd": params["bd"].astype(jnp.float32),
        "wo": wo_pad.astype(jnp.bfloat16),
        "bo": bo_pad.astype(jnp.float32),
    }


def _round_up(x, m):
    return ((x + m - 1) // m) * m


def analogy_forward(packed, x1, x2, x3, x4, *, max_tile=2048):
    B = x1.shape[0]
    size = packed["w_in"].shape[0] // 4     # per-branch flattened input size
    d_h = packed["w_in"].shape[1]           # 4 * H1 (packed hidden width)
    hid1 = d_h // 4
    hid2 = packed["wd"].shape[1]

    # torch .view(B, -1): pure reshape; no concat/cast/pad materialization.
    xs = [xi.reshape(B, -1) for xi in (x1, x2, x3, x4)]

    # Balanced batch tiles: <= max_tile rows, multiple of 8 (sublane), and at
    # least 2 tiles for moderate batches so both v7x TensorCores get work.
    # Ragged last tiles are handled by Pallas' masked boundary DMAs (garbage
    # rows are computed but never written back) -- no jnp.pad pass.
    want_tiles = 2 if B >= 16 else 1
    ntiles = max(-(-B // max_tile), want_tiles)
    tb = min(_round_up(-(-B // ntiles), 8), max_tile)
    grid = -(-B // tb)
    rows = grid * tb            # rows actually streamed (tail rows are masked)

    flops = 2 * rows * (4 * size * d_h + d_h * hid2 + hid2 * OUT_LANES)
    bytes_accessed = (
        rows * 4 * size * 4                     # f32 x stream (4 inputs)
        + rows * d_h * 2                        # bf16 packed-h writeback
        + rows * OUT_LANES * 4                  # narrow f32 head
        + (packed["w_in"].size + packed["wd"].size + packed["wo"].size) * 2
        + (packed["b_in"].size + packed["bd"].size + packed["bo"].size) * 4)

    row = lambda i: (i, 0)        # batch-tiled arrays
    const = lambda i: (0, 0)      # weights: same block every step -> VMEM resident

    h_packed, out_head = pl.pallas_call(
        _analogy_kernel,
        out_shape=(
            jax.ShapeDtypeStruct((B, d_h), jnp.bfloat16),       # packed h1..h4
            jax.ShapeDtypeStruct((B, OUT_LANES), jnp.float32),  # narrow head
        ),
        grid_spec=pltpu.PrefetchScalarGridSpec(
            num_scalar_prefetch=0,
            grid=(grid,),
            in_specs=[
                pl.BlockSpec((tb, size), row),            # x1 (f32)
                pl.BlockSpec((tb, size), row),            # x2
                pl.BlockSpec((tb, size), row),            # x3
                pl.BlockSpec((tb, size), row),            # x4
                pl.BlockSpec((4 * size, d_h), const),     # block-diag input W
                pl.BlockSpec((1, d_h), const),            # packed input bias
                pl.BlockSpec((d_h, hid2), const),         # wd
                pl.BlockSpec((1, hid2), const),           # bd
                pl.BlockSpec((hid2, OUT_LANES), const),   # narrow-padded wo
                pl.BlockSpec((1, OUT_LANES), const),      # narrow-padded bo
            ],
            out_specs=[
                pl.BlockSpec((tb, d_h), row),
                pl.BlockSpec((tb, OUT_LANES), row),
            ],
        ),
        compiler_params=pltpu.CompilerParams(
            dimension_semantics=("parallel",)),
        cost_estimate=pl.CostEstimate(
            flops=flops,
            transcendentals=rows * OUT_LANES,
            bytes_accessed=bytes_accessed),
    )(*xs, packed["w_in"], packed["b_in"], packed["wd"], packed["bd"],
      packed["wo"], packed["bo"])

    out = out_head[:, :1]                 # column 0 is the real sigmoid output
    # NOTE: h1..h4 are returned as bf16 (the MXU operands are bf16 anyway);
    # cast downstream if f32-accurate activations are required.
    h1 = h_packed[:, 0:hid1]
    h2 = h_packed[:, hid1:2 * hid1]
    h3 = h_packed[:, 2 * hid1:3 * hid1]
    h4 = h_packed[:, 3 * hid1:4 * hid1]
    return out, h1, h2, h3, h4


def init_params(key, size, h1, h2):
    """Deterministic init mimicking torch nn.Linear default (U[-1/sqrt(fan_in), +])."""
    def linear(key, fan_in, fan_out):
        kw, kb = jax.random.split(key)
        bound = 1.0 / np.sqrt(fan_in)
        w = jax.random.uniform(kw, (fan_in, fan_out), jnp.float32, -bound, bound)
        b = jax.random.uniform(kb, (1, fan_out), jnp.float32, -bound, bound)
        return w, b

    keys = jax.random.split(key, 6)
    p = {}
    for i, k in enumerate(keys[:4], start=1):
        p[f"w{i}"], p[f"b{i}"] = linear(k, size, h1)
    p["wd"], p["bd"] = linear(keys[4], 4 * h1, h2)
    p["wo"], p["bo"] = linear(keys[5], h2, 1)
    return p


def reference_forward(params, x1, x2, x3, x4):
    """Pure-JAX f32 reference of the PyTorch forward for validation."""
    B = x1.shape[0]
    xs = [x.reshape(B, -1) for x in (x1, x2, x3, x4)]
    hs = [jnp.maximum(xs[i] @ params[f"w{i+1}"] + params[f"b{i+1}"], 0.0)
          for i in range(4)]
    cat = jnp.concatenate(hs, axis=1)
    d = jnp.maximum(cat @ params["wd"] + params["bd"], 0.0)
    out = jax.nn.sigmoid(d @ params["wo"] + params["bo"])
    return (out, hs[0], hs[1], hs[2], hs[3])


def _check(outs, refs, rtol=2e-2, atol=2e-2):
    # bf16 MXU operands / bf16 h writeback vs f32 reference -> ~1e-2 deviation.
    for o, r in zip(outs, refs):
        np.testing.assert_allclose(np.asarray(o).astype(np.float32),
                                   np.asarray(r).astype(np.float32),
                                   rtol=rtol, atol=atol)


if __name__ == "__main__":
    C, H, W = 4, 4, 4                  # flattened size = 64
    SIZE = C * H * W
    H1, H2 = 32, 32                    # input_layers=[32], decision_layers=[32]

    key = jax.random.PRNGKey(0)
    kp, kd = jax.random.split(key)
    params = init_params(kp, SIZE, H1, H2)
    packed = pack_params(params)

    fwd = jax.jit(analogy_forward)

    # --- small test (B=2): single (partially masked) tile ---
    kx = jax.random.split(kd, 4)
    xs_small = [jax.random.normal(kx[i], (2, C, H, W), jnp.float32) for i in range(4)]
    outs = jax.block_until_ready(fwd(packed, *xs_small))
    _check(outs, reference_forward(params, *xs_small))

    # --- larger test (B=260): balanced 2-tile parallel grid + ragged last tile ---
    kx2 = jax.random.split(jax.random.PRNGKey(1), 4)
    xs_big = [jax.random.normal(kx2[i], (260, C, H, W), jnp.float32) for i in range(4)]
    outs_big = jax.block_until_ready(fwd(packed, *xs_big))
    _check(outs_big, reference_forward(params, *xs_big))

    print("KERNEL_OK")
</pallas_src>

<mosaic_0001>
module attributes {stable_mosaic.version = 11 : i64} {
  func.func @_analogy_kernel(%arg0: i32, %arg1: memref<8x64xf32, #tpu.memory_space<vmem>>, %arg2: memref<8x64xf32, #tpu.memory_space<vmem>>, %arg3: memref<8x64xf32, #tpu.memory_space<vmem>>, %arg4: memref<8x64xf32, #tpu.memory_space<vmem>>, %arg5: memref<256x128xbf16, #tpu.memory_space<vmem>>, %arg6: memref<1x128xf32, #tpu.memory_space<vmem>>, %arg7: memref<128x32xbf16, #tpu.memory_space<vmem>>, %arg8: memref<1x32xf32, #tpu.memory_space<vmem>>, %arg9: memref<32x8xbf16, #tpu.memory_space<vmem>>, %arg10: memref<1x8xf32, #tpu.memory_space<vmem>>, %arg11: memref<8x128xbf16, #tpu.memory_space<vmem>>, %arg12: memref<8x8xf32, #tpu.memory_space<vmem>>) attributes {dimension_semantics = [#tpu.dimension_semantics<parallel>], iteration_bounds = array<i64: 1>, scalar_prefetch = 0 : i64, scratch_operands = 0 : i64, tpu.core_type = #tpu.core_type<tc>, window_params = [{transform_indices = @transform_0, window_bounds = array<i64: 8, 64>}, {transform_indices = @transform_1, window_bounds = array<i64: 8, 64>}, {transform_indices = @transform_2, window_bounds = array<i64: 8, 64>}, {transform_indices = @transform_3, window_bounds = array<i64: 8, 64>}, {pipeline_mode = #tpu.pipeline_mode<synchronous>, transform_indices = @transform_4, window_bounds = array<i64: 256, 128>}, {pipeline_mode = #tpu.pipeline_mode<synchronous>, transform_indices = @transform_5, window_bounds = array<i64: 1, 128>}, {pipeline_mode = #tpu.pipeline_mode<synchronous>, transform_indices = @transform_6, window_bounds = array<i64: 128, 32>}, {pipeline_mode = #tpu.pipeline_mode<synchronous>, transform_indices = @transform_7, window_bounds = array<i64: 1, 32>}, {pipeline_mode = #tpu.pipeline_mode<synchronous>, transform_indices = @transform_8, window_bounds = array<i64: 32, 8>}, {pipeline_mode = #tpu.pipeline_mode<synchronous>, transform_indices = @transform_9, window_bounds = array<i64: 1, 8>}, {transform_indices = @transform_10, window_bounds = array<i64: 8, 128>}, {transform_indices = @transform_11, window_bounds = array<i64: 8, 8>}]} {
    %c0 = arith.constant 0 : index
    %c0_0 = arith.constant 0 : index
    %0 = vector.load %arg1[%c0, %c0_0] : memref<8x64xf32, #tpu.memory_space<vmem>>, vector<8x64xf32>
    %1 = arith.truncf %0 : vector<8x64xf32> to vector<8x64xbf16>
    %c0_1 = arith.constant 0 : index
    %c0_2 = arith.constant 0 : index
    %2 = vector.load %arg5[%c0_1, %c0_2] : memref<256x128xbf16, #tpu.memory_space<vmem>>, vector<64x128xbf16>
    %cst = arith.constant dense<0.000000e+00> : vector<8x128xf32>
    %3 = tpu.matmul %1, %2, %cst {dimension_numbers = #tpu.dot_dimension_numbers<[1], [0], [0], [1], [0, 0, 1, 1], [], []>} : vector<8x64xbf16>, vector<64x128xbf16>, vector<8x128xf32> -> vector<8x128xf32>
    %c0_3 = arith.constant 0 : index
    %c0_4 = arith.constant 0 : index
    %4 = vector.load %arg2[%c0_3, %c0_4] : memref<8x64xf32, #tpu.memory_space<vmem>>, vector<8x64xf32>
    %5 = arith.truncf %4 : vector<8x64xf32> to vector<8x64xbf16>
    %c64 = arith.constant 64 : index
    %c0_5 = arith.constant 0 : index
    %6 = vector.load %arg5[%c64, %c0_5] : memref<256x128xbf16, #tpu.memory_space<vmem>>, vector<64x128xbf16>
    %cst_6 = arith.constant dense<0.000000e+00> : vector<8x128xf32>
    %7 = tpu.matmul %5, %6, %cst_6 {dimension_numbers = #tpu.dot_dimension_numbers<[1], [0], [0], [1], [0, 0, 1, 1], [], []>} : vector<8x64xbf16>, vector<64x128xbf16>, vector<8x128xf32> -> vector<8x128xf32>
    %8 = arith.addf %3, %7 : vector<8x128xf32>
    %c0_7 = arith.constant 0 : index
    %c0_8 = arith.constant 0 : index
    %9 = vector.load %arg3[%c0_7, %c0_8] : memref<8x64xf32, #tpu.memory_space<vmem>>, vector<8x64xf32>
    %10 = arith.truncf %9 : vector<8x64xf32> to vector<8x64xbf16>
    %c128 = arith.constant 128 : index
    %c0_9 = arith.constant 0 : index
    %11 = vector.load %arg5[%c128, %c0_9] : memref<256x128xbf16, #tpu.memory_space<vmem>>, vector<64x128xbf16>
    %cst_10 = arith.constant dense<0.000000e+00> : vector<8x128xf32>
    %12 = tpu.matmul %10, %11, %cst_10 {dimension_numbers = #tpu.dot_dimension_numbers<[1], [0], [0], [1], [0, 0, 1, 1], [], []>} : vector<8x64xbf16>, vector<64x128xbf16>, vector<8x128xf32> -> vector<8x128xf32>
    %13 = arith.addf %8, %12 : vector<8x128xf32>
    %c0_11 = arith.constant 0 : index
    %c0_12 = arith.constant 0 : index
    %14 = vector.load %arg4[%c0_11, %c0_12] : memref<8x64xf32, #tpu.memory_space<vmem>>, vector<8x64xf32>
    %15 = arith.truncf %14 : vector<8x64xf32> to vector<8x64xbf16>
    %c192 = arith.constant 192 : index
    %c0_13 = arith.constant 0 : index
    %16 = vector.load %arg5[%c192, %c0_13] : memref<256x128xbf16, #tpu.memory_space<vmem>>, vector<64x128xbf16>
    %cst_14 = arith.constant dense<0.000000e+00> : vector<8x128xf32>
    %17 = tpu.matmul %15, %16, %cst_14 {dimension_numbers = #tpu.dot_dimension_numbers<[1], [0], [0], [1], [0, 0, 1, 1], [], []>} : vector<8x64xbf16>, vector<64x128xbf16>, vector<8x128xf32> -> vector<8x128xf32>
    %18 = arith.addf %13, %17 : vector<8x128xf32>
    %c0_15 = arith.constant 0 : index
    %c0_16 = arith.constant 0 : index
    %19 = vector.load %arg6[%c0_15, %c0_16] : memref<1x128xf32, #tpu.memory_space<vmem>>, vector<1x128xf32>
    %20 = vector.broadcast %19 : vector<1x128xf32> to vector<8x128xf32>
    %21 = arith.addf %18, %20 : vector<8x128xf32>
    %cst_17 = arith.constant 0.000000e+00 : f32
    %22 = vector.broadcast %cst_17 : f32 to vector<8x128xf32>
    %23 = arith.maximumf %21, %22 : vector<8x128xf32>
    %24 = arith.truncf %23 : vector<8x128xf32> to vector<8x128xbf16>
    %c0_18 = arith.constant 0 : index
    %c0_19 = arith.constant 0 : index
    %25 = vector.load %arg11[%c0_18, %c0_19] : memref<8x128xbf16, #tpu.memory_space<vmem>>, vector<8x128xbf16>
    tpu.vector_store %arg11[%c0_18, %c0_19], %24 {strides = array<i32>} : memref<8x128xbf16, #tpu.memory_space<vmem>>, vector<8x128xbf16>,
    %c0_20 = arith.constant 0 : index
    %c0_21 = arith.constant 0 : index
    %26 = vector.load %arg7[%c0_20, %c0_21] : memref<128x32xbf16, #tpu.memory_space<vmem>>, vector<128x32xbf16>
    %cst_22 = arith.constant dense<0.000000e+00> : vector<8x32xf32>
    %27 = tpu.matmul %24, %26, %cst_22 {dimension_numbers = #tpu.dot_dimension_numbers<[1], [0], [0], [1], [0, 0, 1, 1], [], []>} : vector<8x128xbf16>, vector<128x32xbf16>, vector<8x32xf32> -> vector<8x32xf32>
    %c0_23 = arith.constant 0 : index
    %c0_24 = arith.constant 0 : index
    %28 = vector.load %arg8[%c0_23, %c0_24] : memref<1x32xf32, #tpu.memory_space<vmem>>, vector<1x32xf32>
    %29 = vector.broadcast %28 : vector<1x32xf32> to vector<8x32xf32>
    %30 = arith.addf %27, %29 : vector<8x32xf32>
    %cst_25 = arith.constant 0.000000e+00 : f32
    %31 = vector.broadcast %cst_25 : f32 to vector<8x32xf32>
    %32 = arith.maximumf %30, %31 : vector<8x32xf32>
    %33 = arith.truncf %32 : vector<8x32xf32> to vector<8x32xbf16>
    %c0_26 = arith.constant 0 : index
    %c0_27 = arith.constant 0 : index
    %34 = vector.load %arg9[%c0_26, %c0_27] : memref<32x8xbf16, #tpu.memory_space<vmem>>, vector<32x8xbf16>
    %cst_28 = arith.constant dense<0.000000e+00> : vector<8x8xf32>
    %35 = tpu.matmul %33, %34, %cst_28 {dimension_numbers = #tpu.dot_dimension_numbers<[1], [0], [0], [1], [0, 0, 1, 1], [], []>} : vector<8x32xbf16>, vector<32x8xbf16>, vector<8x8xf32> -> vector<8x8xf32>
    %c0_29 = arith.constant 0 : index
    %c0_30 = arith.constant 0 : index
    %36 = vector.load %arg10[%c0_29, %c0_30] : memref<1x8xf32, #tpu.memory_space<vmem>>, vector<1x8xf32>
    %37 = vector.broadcast %36 : vector<1x8xf32> to vector<8x8xf32>
    %38 = arith.addf %35, %37 : vector<8x8xf32>
    %cst_31 = arith.constant 0.000000e+00 : f32
    %39 = vector.broadcast %cst_31 : f32 to vector<8x8xf32>
    %40 = arith.subf %39, %38 : vector<8x8xf32>
    %41 = math.exp %40 : vector<8x8xf32>
    %cst_32 = arith.constant 1.000000e+00 : f32
    %42 = vector.broadcast %cst_32 : f32 to vector<8x8xf32>
    %43 = arith.addf %42, %41 : vector<8x8xf32>
    %44 = tpu.reciprocal %43 {approx = true} : vector<8x8xf32> -> vector<8x8xf32>
    %c0_33 = arith.constant 0 : index
    %c0_34 = arith.constant 0 : index
    %45 = vector.load %arg12[%c0_33, %c0_34] : memref<8x8xf32, #tpu.memory_space<vmem>>, vector<8x8xf32>
    tpu.vector_store %arg12[%c0_33, %c0_34], %44 {strides = array<i32>} : memref<8x8xf32, #tpu.memory_space<vmem>>, vector<8x8xf32>,
    return
  }
  func.func @transform_0(%arg0: i32) -> (i32, i32) {
    %c0_i32 = arith.constant 0 : i32
    %c0_i32_0 = arith.constant 0 : i32
    return %arg0, %c0_i32 : i32, i32
  }
  func.func @transform_1(%arg0: i32) -> (i32, i32) {
    %c0_i32 = arith.constant 0 : i32
    %c0_i32_0 = arith.constant 0 : i32
    return %arg0, %c0_i32 : i32, i32
  }
  func.func @transform_2(%arg0: i32) -> (i32, i32) {
    %c0_i32 = arith.constant 0 : i32
    %c0_i32_0 = arith.constant 0 : i32
    return %arg0, %c0_i32 : i32, i32
  }
  func.func @transform_3(%arg0: i32) -> (i32, i32) {
    %c0_i32 = arith.constant 0 : i32
    %c0_i32_0 = arith.constant 0 : i32
    return %arg0, %c0_i32 : i32, i32
  }
  func.func @transform_4(%arg0: i32) -> (i32, i32) {
    %c0_i32 = arith.constant 0 : i32
    %c0_i32_0 = arith.constant 0 : i32
    %c0_i32_1 = arith.constant 0 : i32
    return %c0_i32, %c0_i32_0 : i32, i32
  }
  func.func @transform_5(%arg0: i32) -> (i32, i32) {
    %c0_i32 = arith.constant 0 : i32
    %c0_i32_0 = arith.constant 0 : i32
    %c0_i32_1 = arith.constant 0 : i32
    return %c0_i32, %c0_i32_0 : i32, i32
  }
  func.func @transform_6(%arg0: i32) -> (i32, i32) {
    %c0_i32 = arith.constant 0 : i32
    %c0_i32_0 = arith.constant 0 : i32
    %c0_i32_1 = arith.constant 0 : i32
    return %c0_i32, %c0_i32_0 : i32, i32
  }
  func.func @transform_7(%arg0: i32) -> (i32, i32) {
    %c0_i32 = arith.constant 0 : i32
    %c0_i32_0 = arith.constant 0 : i32
    %c0_i32_1 = arith.constant 0 : i32
    return %c0_i32, %c0_i32_0 : i32, i32
  }
  func.func @transform_8(%arg0: i32) -> (i32, i32) {
    %c0_i32 = arith.constant 0 : i32
    %c0_i32_0 = arith.constant 0 : i32
    %c0_i32_1 = arith.constant 0 : i32
    return %c0_i32, %c0_i32_0 : i32, i32
  }
  func.func @transform_9(%arg0: i32) -> (i32, i32) {
    %c0_i32 = arith.constant 0 : i32
    %c0_i32_0 = arith.constant 0 : i32
    %c0_i32_1 = arith.constant 0 : i32
    return %c0_i32, %c0_i32_0 : i32, i32
  }
  func.func @transform_10(%arg0: i32) -> (i32, i32) {
    %c0_i32 = arith.constant 0 : i32
    %c0_i32_0 = arith.constant 0 : i32
    return %arg0, %c0_i32 : i32, i32
  }
  func.func @transform_11(%arg0: i32) -> (i32, i32) {
    %c0_i32 = arith.constant 0 : i32
    %c0_i32_0 = arith.constant 0 : i32
    return %arg0, %c0_i32 : i32, i32
  }
}

</mosaic_0001>

<llo_original>
// kernel: analogy_forward.1
$region0: #{analogy_forward.1}
  #allocation0 [shape = 'u32[]', space=smem, size = 0x4, offset = 0x4, fixed_abs, tag = 'smem constant byte address 0x4 - core index']
  #allocation1 [shape = 'u32[144,128]{1,0:T(1,128)}', space=vmem, size = 0x12000, scoped, tag = 'internal scratch']
  %s0 = inlined_call_operand.vmem [shape: f32[2,64], index: 0, kind: input, shape index: {}]
  %s1 = inlined_call_operand.vmem [shape: f32[2,64], index: 1, kind: input, shape index: {}]
  %s2 = inlined_call_operand.vmem [shape: f32[2,64], index: 2, kind: input, shape index: {}]
  %s3 = inlined_call_operand.vmem [shape: f32[2,64], index: 3, kind: input, shape index: {}]
  %s4 = inlined_call_operand.vmem [shape: bf16[256,128], index: 4, kind: input, shape index: {}]
  %s5 = inlined_call_operand.vmem [shape: f32[1,128], index: 5, kind: input, shape index: {}]
  %s6 = inlined_call_operand.vmem [shape: bf16[128,32], index: 6, kind: input, shape index: {}]
  %s7 = inlined_call_operand.vmem [shape: f32[1,32], index: 7, kind: input, shape index: {}]
  %s8 = inlined_call_operand.vmem [shape: bf16[32,8], index: 8, kind: input, shape index: {}]
  %s9 = inlined_call_operand.vmem [shape: f32[1,8], index: 9, kind: input, shape index: {}]
  %s10 = inlined_call_operand.vmem [shape: bf16[2,128], index: 10, kind: output, shape index: {0}]
  %s11 = inlined_call_operand.vmem [shape: f32[2,8], index: 11, kind: output, shape index: {1}]
  %12 = xla_tuple %s10, %s11
  %s13 = sld [smem:[#allocation0]]
  $region118: #{analogy_forward.1} parent=0
    _
  %s15 = ssub.s32 1, %s13
  %s16 = scalar_select 0, %s15, %s13
  $region1: #{analogy_forward.1} parent=0
    #allocation2 [shape = 'u8[2048]{0}', space=vmem, size = 0x800, scoped, tag = 'output window, operand 0, single buffered']
    #allocation3 [shape = 'u8[4096]{0}', space=vmem, size = 0x1000, scoped, tag = 'output window, operand 1, single buffered']
    // Predicated region
    $region2: #{analogy_forward.1} parent=1 // pred_check
      _
    $region3: #{analogy_forward.1} parent=1 // pred_check_branch
      %18 = sbr.rel (0) target = $region5
    $region4: #{analogy_forward.1} parent=1 // pred_region
      _
    $region5: #{analogy_forward.1} parent=1 // pred_fallthru
      _
    // Predicated region
    $region6: #{analogy_forward.1} parent=1 // pred_check
      _
    $region7: #{analogy_forward.1} parent=1 // pred_check_branch
      %20 = sbr.rel (0) target = $region9
    $region8: #{analogy_forward.1} parent=1 // pred_region
      _
    $region9: #{analogy_forward.1} parent=1 // pred_fallthru
      _
    // Predicated region
    $region10: #{analogy_forward.1} parent=1 // pred_check
      _
    $region11: #{analogy_forward.1} parent=1 // pred_check_branch
      %22 = sbr.rel (0) target = $region13
    $region12: #{analogy_forward.1} parent=1 // pred_region
      _
    $region13: #{analogy_forward.1} parent=1 // pred_fallthru
      _
    // Predicated region
    $region14: #{analogy_forward.1} parent=1 // pred_check
      _
    $region15: #{analogy_forward.1} parent=1 // pred_check_branch
      %24 = sbr.rel (0) target = $region17
    $region16: #{analogy_forward.1} parent=1 // pred_region
      _
    $region17: #{analogy_forward.1} parent=1 // pred_fallthru
      _
    // Predicated region
    $region18: #{analogy_forward.1} parent=1 // pred_check
      _
    $region19: #{analogy_forward.1} parent=1 // pred_check_branch
      %26 = sbr.rel (0) target = $region21
    $region20: #{analogy_forward.1} parent=1 // pred_region
      _
    $region21: #{analogy_forward.1} parent=1 // pred_fallthru
      _
    // Predicated region
    $region22: #{analogy_forward.1} parent=1 // pred_check
      _
    $region23: #{analogy_forward.1} parent=1 // pred_check_branch
      %28 = sbr.rel (0) target = $region25
    $region24: #{analogy_forward.1} parent=1 // pred_region
      _
    $region25: #{analogy_forward.1} parent=1 // pred_fallthru
      _
    // Predicated region
    $region26: #{analogy_forward.1} parent=1 // pred_check
      _
    $region27: #{analogy_forward.1} parent=1 // pred_check_branch
      %30 = sbr.rel (0) target = $region29
    $region28: #{analogy_forward.1} parent=1 // pred_region
      _
    $region29: #{analogy_forward.1} parent=1 // pred_fallthru
      _
    // Predicated region
    $region30: #{analogy_forward.1} parent=1 // pred_check
      _
    $region31: #{analogy_forward.1} parent=1 // pred_check_branch
      %32 = sbr.rel (0) target = $region33
    $region32: #{analogy_forward.1} parent=1 // pred_region
      _
    $region33: #{analogy_forward.1} parent=1 // pred_fallthru
      _
    // Predicated region
    $region34: #{analogy_forward.1} parent=1 // pred_check
      _
    $region35: #{analogy_forward.1} parent=1 // pred_check_branch
      %34 = sbr.rel (0) target = $region37
    $region36: #{analogy_forward.1} parent=1 // pred_region
      _
    $region37: #{analogy_forward.1} parent=1 // pred_fallthru
      _
    // Predicated region
    $region38: #{analogy_forward.1} parent=1 // pred_check
      _
    $region39: #{analogy_forward.1} parent=1 // pred_check_branch
      %36 = sbr.rel (0) target = $region41
    $region40: #{analogy_forward.1} parent=1 // pred_region
      _
    $region41: #{analogy_forward.1} parent=1 // pred_fallthru
      _
    %v38 = vld [vmem:[%s0] sm:$0xff]
    %v39 = vpack.c.bf16 %v38, %v38
    %v40 = vld [vmem:[%s4] sm:$0xf]
    %v41 = vld [vmem:[%s4 + $0x4] sm:$0xf]
    %v42 = vld [vmem:[%s4 + $0x8] sm:$0xf]
    %v43 = vld [vmem:[%s4 + $0xc] sm:$0xf]
    %v44 = vld [vmem:[%s4 + $0x10] sm:$0xf]
    %v45 = vld [vmem:[%s4 + $0x14] sm:$0xf]
    %v46 = vld [vmem:[%s4 + $0x18] sm:$0xf]
    %v47 = vld [vmem:[%s4 + $0x1c] sm:$0xf]
    %v48 = vld [vmem:[%s1] sm:$0xff]
    %v49 = vpack.c.bf16 %v48, %v48
    %v50 = vld [vmem:[%s4 + $0x20] sm:$0xf]
    %v51 = vld [vmem:[%s4 + $0x24] sm:$0xf]
    %v52 = vld [vmem:[%s4 + $0x28] sm:$0xf]
    %v53 = vld [vmem:[%s4 + $0x2c] sm:$0xf]
    %v54 = vld [vmem:[%s4 + $0x30] sm:$0xf]
    %v55 = vld [vmem:[%s4 + $0x34] sm:$0xf]
    %v56 = vld [vmem:[%s4 + $0x38] sm:$0xf]
    %v57 = vld [vmem:[%s4 + $0x3c] sm:$0xf]
    %v66 = vunpack.c.l.b16 %v50
    %v67 = vunpack.c.l.b16 %v51
    %v68 = vunpack.c.l.b16 %v52
    %v69 = vunpack.c.l.b16 %v53
    %v70 = vunpack.c.l.b16 %v54
    %v71 = vunpack.c.l.b16 %v55
    %v72 = vunpack.c.l.b16 %v56
    %v73 = vunpack.c.l.b16 %v57
    %v74 = vpack.c.b16 %v67, %v66
    %v75 = vpack.c.b16 %v69, %v68
    %v76 = vpack.c.b16 %v71, %v70
    %v77 = vpack.c.b16 %v73, %v72
    %vm82 = vcmask 523264
    %v84 = vsel %vm82, %v49, 0
    %86 = vmatprep.subr.bf16.mxu0 0
    %87 = vmatpush1.bf16.msra.mxu0 %v74
    %88 = vmatprep.subr.bf16.mxu0 0
    %89 = vmatpush1.bf16.msra.mxu0 %v75
    %90 = vmatprep.subr.bf16.mxu0 0
    %91 = vmatpush1.bf16.msra.mxu0 %v76
    %92 = vmatprep.subr.bf16.mxu0 0
    %93 = vmatpush1.bf16.msra.mxu0 %v77
    %94 = vmatprep.subr.bf16.mxu0 0
    %95 = vmatpush1.bf16.msra.mxu0 0
    %96 = vmatprep.subr.bf16.mxu0 0
    %97 = vmatpush1.bf16.msra.mxu0 0
    %98 = vmatprep.subr.bf16.mxu0 0
    %99 = vmatpush1.bf16.msra.mxu0 0
    %100 = vmatprep.subr.bf16.mxu0 0
    %101 = vmatpush1.bf16.msra.mxu0 0
    %102 = vmatprep.subr.bf16.mxu0 0
    %103 = vmatpush1.bf16.msra.mxu0 0
    %104 = vmatprep.subr.bf16.mxu0 0
    %105 = vmatpush1.bf16.msra.mxu0 0
    %106 = vmatprep.subr.bf16.mxu0 0
    %107 = vmatpush1.bf16.msra.mxu0 0
    %108 = vmatprep.subr.bf16.mxu0 0
    %109 = vmatpush1.bf16.msra.mxu0 0
    %110 = vmatprep.subr.bf16.mxu0 0
    %111 = vmatpush1.bf16.msra.mxu0 0
    %112 = vmatprep.subr.bf16.mxu0 0
    %113 = vmatpush1.bf16.msra.mxu0 0
    %114 = vmatprep.subr.bf16.mxu0 0
    %115 = vmatpush1.bf16.msra.mxu0 0
    %116 = vmatprep.subr.bf16.mxu0 0
    %117 = vmatpush1.bf16.msra.mxu0 0
    %118 = vmatprep.mubr.bf16.mxu0 0
    %119 = vmatmul.mubr.bf16.gmra.mrb[0].mxu0 %v84
    %v120 = vpop.f32.mrb[0].mxu0
    %v121 = vadd.f32 0.0, %v120
    %v122 = vpop.f32.mrb[0].mxu0
    %v123 = vpop.f32.mrb[0].mxu0
    %v124 = vpop.f32.mrb[0].mxu0
    %125 = vdwg.mxu0
    %v134 = vunpack.c.l.b16 %v40
    %v135 = vunpack.c.l.b16 %v41
    %v136 = vunpack.c.l.b16 %v42
    %v137 = vunpack.c.l.b16 %v43
    %v138 = vunpack.c.l.b16 %v44
    %v139 = vunpack.c.l.b16 %v45
    %v140 = vunpack.c.l.b16 %v46
    %v141 = vunpack.c.l.b16 %v47
    %v142 = vpack.c.b16 %v135, %v134
    %v143 = vpack.c.b16 %v137, %v136
    %v144 = vpack.c.b16 %v139, %v138
    %v145 = vpack.c.b16 %v141, %v140
    %v151 = vsel %vm82, %v39, 0
    %153 = vmatprep.subr.bf16.mxu0 0
    %154 = vmatpush1.bf16.msra.mxu0 %v142
    %155 = vmatprep.subr.bf16.mxu0 0
    %156 = vmatpush1.bf16.msra.mxu0 %v143
    %157 = vmatprep.subr.bf16.mxu0 0
    %158 = vmatpush1.bf16.msra.mxu0 %v144
    %159 = vmatprep.subr.bf16.mxu0 0
    %160 = vmatpush1.bf16.msra.mxu0 %v145
    %161 = vmatprep.subr.bf16.mxu0 0
    %162 = vmatpush1.bf16.msra.mxu0 0
    %163 = vmatprep.subr.bf16.mxu0 0
    %164 = vmatpush1.bf16.msra.mxu0 0
    %165 = vmatprep.subr.bf16.mxu0 0
    %166 = vmatpush1.bf16.msra.mxu0 0
    %167 = vmatprep.subr.bf16.mxu0 0
    %168 = vmatpush1.bf16.msra.mxu0 0
    %169 = vmatprep.subr.bf16.mxu0 0
    %170 = vmatpush1.bf16.msra.mxu0 0
    %171 = vmatprep.subr.bf16.mxu0 0
    %172 = vmatpush1.bf16.msra.mxu0 0
    %173 = vmatprep.subr.bf16.mxu0 0
    %174 = vmatpush1.bf16.msra.mxu0 0
    %175 = vmatprep.subr.bf16.mxu0 0
    %176 = vmatpush1.bf16.msra.mxu0 0
    %177 = vmatprep.subr.bf16.mxu0 0
    %178 = vmatpush1.bf16.msra.mxu0 0
    %179 = vmatprep.subr.bf16.mxu0 0
    %180 = vmatpush1.bf16.msra.mxu0 0
    %181 = vmatprep.subr.bf16.mxu0 0
    %182 = vmatpush1.bf16.msra.mxu0 0
    %183 = vmatprep.subr.bf16.mxu0 0
    %184 = vmatpush1.bf16.msra.mxu0 0
    %185 = vmatprep.mubr.bf16.mxu0 0
    %186 = vmatmul.mubr.bf16.gmra.mrb[0].mxu0 %v151
    %v187 = vpop.f32.mrb[0].mxu0
    %v188 = vadd.f32 %v121, %v187
    %v189 = vpop.f32.mrb[0].mxu0
    %v190 = vpop.f32.mrb[0].mxu0
    %v191 = vpop.f32.mrb[0].mxu0
    %192 = vdwg.mxu0
    %v193 = vld [vmem:[%s2] sm:$0xff]
    %v194 = vpack.c.bf16 %v193, %v193
    %v195 = vld [vmem:[%s4 + $0x40] sm:$0xf]
    %v196 = vld [vmem:[%s4 + $0x44] sm:$0xf]
    %v197 = vld [vmem:[%s4 + $0x48] sm:$0xf]
    %v198 = vld [vmem:[%s4 + $0x4c] sm:$0xf]
    %v199 = vld [vmem:[%s4 + $0x50] sm:$0xf]
    %v200 = vld [vmem:[%s4 + $0x54] sm:$0xf]
    %v201 = vld [vmem:[%s4 + $0x58] sm:$0xf]
    %v202 = vld [vmem:[%s4 + $0x5c] sm:$0xf]
    %v211 = vunpack.c.l.b16 %v195
    %v212 = vunpack.c.l.b16 %v196
    %v213 = vunpack.c.l.b16 %v197
    %v214 = vunpack.c.l.b16 %v198
    %v215 = vunpack.c.l.b16 %v199
    %v216 = vunpack.c.l.b16 %v200
    %v217 = vunpack.c.l.b16 %v201
    %v218 = vunpack.c.l.b16 %v202
    %v219 = vpack.c.b16 %v212, %v211
    %v220 = vpack.c.b16 %v214, %v213
    %v221 = vpack.c.b16 %v216, %v215
    %v222 = vpack.c.b16 %v218, %v217
    %v228 = vsel %vm82, %v194, 0
    %230 = vmatprep.subr.bf16.mxu0 0
    %231 = vmatpush1.bf16.msra.mxu0 %v219
    %232 = vmatprep.subr.bf16.mxu0 0
    %233 = vmatpush1.bf16.msra.mxu0 %v220
    %234 = vmatprep.subr.bf16.mxu0 0
    %235 = vmatpush1.bf16.msra.mxu0 %v221
    %236 = vmatprep.subr.bf16.mxu0 0
    %237 = vmatpush1.bf16.msra.mxu0 %v222
    %238 = vmatprep.subr.bf16.mxu0 0
    %239 = vmatpush1.bf16.msra.mxu0 0
    %240 = vmatprep.subr.bf16.mxu0 0
    %241 = vmatpush1.bf16.msra.mxu0 0
    %242 = vmatprep.subr.bf16.mxu0 0
    %243 = vmatpush1.bf16.msra.mxu0 0
    %244 = vmatprep.subr.bf16.mxu0 0
    %245 = vmatpush1.bf16.msra.mxu0 0
    %246 = vmatprep.subr.bf16.mxu0 0
    %247 = vmatpush1.bf16.msra.mxu0 0
    %248 = vmatprep.subr.bf16.mxu0 0
    %249 = vmatpush1.bf16.msra.mxu0 0
    %250 = vmatprep.subr.bf16.mxu0 0
    %251 = vmatpush1.bf16.msra.mxu0 0
    %252 = vmatprep.subr.bf16.mxu0 0
    %253 = vmatpush1.bf16.msra.mxu0 0
    %254 = vmatprep.subr.bf16.mxu0 0
    %255 = vmatpush1.bf16.msra.mxu0 0
    %256 = vmatprep.subr.bf16.mxu0 0
    %257 = vmatpush1.bf16.msra.mxu0 0
    %258 = vmatprep.subr.bf16.mxu0 0
    %259 = vmatpush1.bf16.msra.mxu0 0
    %260 = vmatprep.subr.bf16.mxu0 0
    %261 = vmatpush1.bf16.msra.mxu0 0
    %262 = vmatprep.mubr.bf16.mxu0 0
    %263 = vmatmul.mubr.bf16.gmra.mrb[0].mxu0 %v228
    %v264 = vpop.f32.mrb[0].mxu0
    %v265 = vadd.f32 0.0, %v264
    %v266 = vpop.f32.mrb[0].mxu0
    %v267 = vpop.f32.mrb[0].mxu0
    %v268 = vpop.f32.mrb[0].mxu0
    %269 = vdwg.mxu0
    %v270 = vadd.f32 %v188, %v265
    %v271 = vld [vmem:[%s3] sm:$0xff]
    %v272 = vpack.c.bf16 %v271, %v271
    %v273 = vld [vmem:[%s4 + $0x60] sm:$0xf]
    %v274 = vld [vmem:[%s4 + $0x64] sm:$0xf]
    %v275 = vld [vmem:[%s4 + $0x68] sm:$0xf]
    %v276 = vld [vmem:[%s4 + $0x6c] sm:$0xf]
    %v277 = vld [vmem:[%s4 + $0x70] sm:$0xf]
    %v278 = vld [vmem:[%s4 + $0x74] sm:$0xf]
    %v279 = vld [vmem:[%s4 + $0x78] sm:$0xf]
    %v280 = vld [vmem:[%s4 + $0x7c] sm:$0xf]
    %v289 = vunpack.c.l.b16 %v273
    %v290 = vunpack.c.l.b16 %v274
    %v291 = vunpack.c.l.b16 %v275
    %v292 = vunpack.c.l.b16 %v276
    %v293 = vunpack.c.l.b16 %v277
    %v294 = vunpack.c.l.b16 %v278
    %v295 = vunpack.c.l.b16 %v279
    %v296 = vunpack.c.l.b16 %v280
    %v297 = vpack.c.b16 %v290, %v289
    %v298 = vpack.c.b16 %v292, %v291
    %v299 = vpack.c.b16 %v294, %v293
    %v300 = vpack.c.b16 %v296, %v295
    %v306 = vsel %vm82, %v272, 0
    %308 = vmatprep.subr.bf16.mxu0 0
    %309 = vmatpush1.bf16.msra.mxu0 %v297
    %310 = vmatprep.subr.bf16.mxu0 0
    %311 = vmatpush1.bf16.msra.mxu0 %v298
    %312 = vmatprep.subr.bf16.mxu0 0
    %313 = vmatpush1.bf16.msra.mxu0 %v299
    %314 = vmatprep.subr.bf16.mxu0 0
    %315 = vmatpush1.bf16.msra.mxu0 %v300
    %316 = vmatprep.subr.bf16.mxu0 0
    %317 = vmatpush1.bf16.msra.mxu0 0
    %318 = vmatprep.subr.bf16.mxu0 0
    %319 = vmatpush1.bf16.msra.mxu0 0
    %320 = vmatprep.subr.bf16.mxu0 0
    %321 = vmatpush1.bf16.msra.mxu0 0
    %322 = vmatprep.subr.bf16.mxu0 0
    %323 = vmatpush1.bf16.msra.mxu0 0
    %324 = vmatprep.subr.bf16.mxu0 0
    %325 = vmatpush1.bf16.msra.mxu0 0
    %326 = vmatprep.subr.bf16.mxu0 0
    %327 = vmatpush1.bf16.msra.mxu0 0
    %328 = vmatprep.subr.bf16.mxu0 0
    %329 = vmatpush1.bf16.msra.mxu0 0
    %330 = vmatprep.subr.bf16.mxu0 0
    %331 = vmatpush1.bf16.msra.mxu0 0
    %332 = vmatprep.subr.bf16.mxu0 0
    %333 = vmatpush1.bf16.msra.mxu0 0
    %334 = vmatprep.subr.bf16.mxu0 0
    %335 = vmatpush1.bf16.msra.mxu0 0
    %336 = vmatprep.subr.bf16.mxu0 0
    %337 = vmatpush1.bf16.msra.mxu0 0
    %338 = vmatprep.subr.bf16.mxu0 0
    %339 = vmatpush1.bf16.msra.mxu0 0
    %340 = vmatprep.mubr.bf16.mxu0 0
    %341 = vmatmul.mubr.bf16.gmra.mrb[0].mxu0 %v306
    %v342 = vpop.f32.mrb[0].mxu0
    %v343 = vadd.f32 0.0, %v342
    %v344 = vpop.f32.mrb[0].mxu0
    %v345 = vpop.f32.mrb[0].mxu0
    %v346 = vpop.f32.mrb[0].mxu0
    %347 = vdwg.mxu0
    %v348 = vadd.f32 %v270, %v343
    %v349 = vld [vmem:[%s5] sm:$0x1]
    %v351 = vlaneseq
    %v352 = vshrl.u32 %v351, 7
    %v353 = vsub.s32 0, %v352
    %v354 = vrot.slane %v349, %v353
    %v356 = vadd.f32 %v348, %v354
    %v357 = vmax.f32 %v356, 0.0
    %v358 = vpack.c.bf16 %v357, %v357
    %v361 = vunpack.c.l.s4 1966171168
    %v362 = vunpack.c.0.s8 %v361
    %v363 = vlaneseq
    %v364 = vshrl.u32 %v363, 7
    %v365 = vsub.s32 %v362, %v364
    %v366 = vrot.slane %v358, %v365
    %v367 = vcombine.high %v366, %v366
    %v369 = vunpack.c.l.s4 1966171168
    %v370 = vunpack.c.0.s8 %v369
    %v371 = vlaneseq
    %v372 = vshrl.u32 %v371, 7
    %v373 = vsub.s32 %v370, %v372
    %v374 = vrot.slane %v366, %v373
    %v376 = vunpack.c.l.s4 1966171168
    %v377 = vunpack.c.0.s8 %v376
    %v378 = vlaneseq
    %v379 = vshrl.u32 %v378, 7
    %v380 = vsub.s32 %v377, %v379
    %v381 = vrot.slane %v367, %v380
    %v382 = vcombine.high %v374, %v374
    %v383 = vcombine.high %v381, %v381
    %388 = vst [vmem:[#allocation2] sm:$0x1] %v374
    %389 = vst [vmem:[#allocation2 + $0x1] sm:$0x1] %v381
    %390 = vst [vmem:[#allocation2 + $0x2] sm:$0x1] %v382
    %391 = vst [vmem:[#allocation2 + $0x3] sm:$0x1] %v383
    %v392 = vld [vmem:[%s6] sm:$0xf]
    %v393 = vld [vmem:[%s6 + $0x4] sm:$0xf]
    %v394 = vld [vmem:[%s6 + $0x8] sm:$0xf]
    %v395 = vld [vmem:[%s6 + $0xc] sm:$0xf]
    %v396 = vld [vmem:[%s6 + $0x10] sm:$0xf]
    %v397 = vld [vmem:[%s6 + $0x14] sm:$0xf]
    %v398 = vld [vmem:[%s6 + $0x18] sm:$0xf]
    %v399 = vld [vmem:[%s6 + $0x1c] sm:$0xf]
    %v400 = vld [vmem:[%s6 + $0x20] sm:$0xf]
    %v401 = vld [vmem:[%s6 + $0x24] sm:$0xf]
    %v402 = vld [vmem:[%s6 + $0x28] sm:$0xf]
    %v403 = vld [vmem:[%s6 + $0x2c] sm:$0xf]
    %v404 = vld [vmem:[%s6 + $0x30] sm:$0xf]
    %v405 = vld [vmem:[%s6 + $0x34] sm:$0xf]
    %v406 = vld [vmem:[%s6 + $0x38] sm:$0xf]
    %v407 = vld [vmem:[%s6 + $0x3c] sm:$0xf]
    %v408 = vld [vmem:[%s7] sm:$0x1]
    %v410 = vlaneseq
    %v411 = vshrl.u32 %v410, 7
    %v412 = vsub.s32 0, %v411
    %v413 = vrot.slane %v408, %v412
    %v431 = vunpack.c.l.b16 %v392
    %v432 = vunpack.c.l.b16 %v393
    %v433 = vunpack.c.l.b16 %v394
    %v434 = vunpack.c.l.b16 %v395
    %v435 = vunpack.c.l.b16 %v396
    %v436 = vunpack.c.l.b16 %v397
    %v437 = vunpack.c.l.b16 %v398
    %v438 = vunpack.c.l.b16 %v399
    %v439 = vunpack.c.l.b16 %v400
    %v440 = vunpack.c.l.b16 %v401
    %v441 = vunpack.c.l.b16 %v402
    %v442 = vunpack.c.l.b16 %v403
    %v443 = vunpack.c.l.b16 %v404
    %v444 = vunpack.c.l.b16 %v405
    %v445 = vunpack.c.l.b16 %v406
    %v446 = vunpack.c.l.b16 %v407
    %v447 = vpack.c.b16 %v432, %v431
    %v448 = vpack.c.b16 %v434, %v433
    %v449 = vpack.c.b16 %v436, %v435
    %v450 = vpack.c.b16 %v438, %v437
    %v451 = vpack.c.b16 %v440, %v439
    %v452 = vpack.c.b16 %v442, %v441
    %v453 = vpack.c.b16 %v444, %v443
    %v454 = vpack.c.b16 %v446, %v445
    %463 = vmatprep.subr.bf16.mxu0 0
    %464 = vmatpush1.bf16.msra.mxu0 %v447
    %465 = vmatprep.subr.bf16.mxu0 0
    %466 = vmatpush1.bf16.msra.mxu0 %v448
    %467 = vmatprep.subr.bf16.mxu0 0
    %468 = vmatpush1.bf16.msra.mxu0 %v449
    %469 = vmatprep.subr.bf16.mxu0 0
    %470 = vmatpush1.bf16.msra.mxu0 %v450
    %471 = vmatprep.subr.bf16.mxu0 0
    %472 = vmatpush1.bf16.msra.mxu0 %v451
    %473 = vmatprep.subr.bf16.mxu0 0
    %474 = vmatpush1.bf16.msra.mxu0 %v452
    %475 = vmatprep.subr.bf16.mxu0 0
    %476 = vmatpush1.bf16.msra.mxu0 %v453
    %477 = vmatprep.subr.bf16.mxu0 0
    %478 = vmatpush1.bf16.msra.mxu0 %v454
    %479 = vmatprep.subr.bf16.mxu0 0
    %480 = vmatpush1.bf16.msra.mxu0 0
    %481 = vmatprep.subr.bf16.mxu0 0
    %482 = vmatpush1.bf16.msra.mxu0 0
    %483 = vmatprep.subr.bf16.mxu0 0
    %484 = vmatpush1.bf16.msra.mxu0 0
    %485 = vmatprep.subr.bf16.mxu0 0
    %486 = vmatpush1.bf16.msra.mxu0 0
    %487 = vmatprep.subr.bf16.mxu0 0
    %488 = vmatpush1.bf16.msra.mxu0 0
    %489 = vmatprep.subr.bf16.mxu0 0
    %490 = vmatpush1.bf16.msra.mxu0 0
    %491 = vmatprep.subr.bf16.mxu0 0
    %492 = vmatpush1.bf16.msra.mxu0 0
    %493 = vmatprep.subr.bf16.mxu0 0
    %494 = vmatpush1.bf16.msra.mxu0 0
    %495 = vmatprep.mubr.bf16.mxu0 0
    %496 = vmatmul.mubr.bf16.gmra.mrb[0].mxu0 %v358
    %v497 = vpop.f32.mrb[0].mxu0
    %v498 = vadd.f32 %v413, %v497
    %v499 = vpop.f32.mrb[0].mxu0
    %v500 = vpop.f32.mrb[0].mxu0
    %v501 = vpop.f32.mrb[0].mxu0
    %502 = vdwg.mxu0
    %v503 = vmax.f32 %v498, 0.0
    %v504 = vpack.c.bf16 %v503, %v503
    %v505 = vld [vmem:[%s8] sm:$0xf]
    %v506 = vld [vmem:[%s8 + $0x4] sm:$0xf]
    %v507 = vld [vmem:[%s8 + $0x8] sm:$0xf]
    %v508 = vld [vmem:[%s8 + $0xc] sm:$0xf]
    %v509 = vld [vmem:[%s9] sm:$0x1]
    %v511 = vlaneseq
    %v512 = vshrl.u32 %v511, 7
    %v513 = vsub.s32 0, %v512
    %v514 = vrot.slane %v509, %v513
    %v520 = vunpack.c.l.b16 %v505
    %v521 = vunpack.c.l.b16 %v506
    %v522 = vunpack.c.l.b16 %v507
    %v523 = vunpack.c.l.b16 %v508
    %v524 = vpack.c.b16 %v521, %v520
    %v525 = vpack.c.b16 %v523, %v522
    %vm528 = vcmask 261120
    %v530 = vsel %vm528, %v504, 0
    %532 = vmatprep.subr.bf16.mxu0 0
    %533 = vmatpush1.bf16.msra.mxu0 %v524
    %534 = vmatprep.subr.bf16.mxu0 0
    %535 = vmatpush1.bf16.msra.mxu0 %v525
    %536 = vmatprep.subr.bf16.mxu0 0
    %537 = vmatpush1.bf16.msra.mxu0 0
    %538 = vmatprep.subr.bf16.mxu0 0
    %539 = vmatpush1.bf16.msra.mxu0 0
    %540 = vmatprep.subr.bf16.mxu0 0
    %541 = vmatpush1.bf16.msra.mxu0 0
    %542 = vmatprep.subr.bf16.mxu0 0
    %543 = vmatpush1.bf16.msra.mxu0 0
    %544 = vmatprep.subr.bf16.mxu0 0
    %545 = vmatpush1.bf16.msra.mxu0 0
    %546 = vmatprep.subr.bf16.mxu0 0
    %547 = vmatpush1.bf16.msra.mxu0 0
    %548 = vmatprep.subr.bf16.mxu0 0
    %549 = vmatpush1.bf16.msra.mxu0 0
    %550 = vmatprep.subr.bf16.mxu0 0
    %551 = vmatpush1.bf16.msra.mxu0 0
    %552 = vmatprep.subr.bf16.mxu0 0
    %553 = vmatpush1.bf16.msra.mxu0 0
    %554 = vmatprep.subr.bf16.mxu0 0
    %555 = vmatpush1.bf16.msra.mxu0 0
    %556 = vmatprep.subr.bf16.mxu0 0
    %557 = vmatpush1.bf16.msra.mxu0 0
    %558 = vmatprep.subr.bf16.mxu0 0
    %559 = vmatpush1.bf16.msra.mxu0 0
    %560 = vmatprep.subr.bf16.mxu0 0
    %561 = vmatpush1.bf16.msra.mxu0 0
    %562 = vmatprep.subr.bf16.mxu0 0
    %563 = vmatpush1.bf16.msra.mxu0 0
    %564 = vmatprep.mubr.bf16.mxu0 0
    %565 = vmatmul.mubr.bf16.gmra.mrb[0].mxu0 %v530
    %v566 = vpop.f32.mrb[0].mxu0
    %v567 = vadd.f32 %v514, %v566
    %v568 = vpop.f32.mrb[0].mxu0
    %v569 = vpop.f32.mrb[0].mxu0
    %v570 = vpop.f32.mrb[0].mxu0
    %571 = vdwg.mxu0
    %v572 = vsub.f32 0.0, %v567
    %v573 = vmul.f32 %v572, 1.442695
    %v574 = vpow.pop %v573
    %v575 = vadd.f32 %v574, 1.0
    %v576 = vrcp.pop %v575
    %vm577 = vcmask 64512
    %578 = vst.msk [vmem:[#allocation3] sm:$0xff] %vm577, %v576
    // Predicated region
    $region42: #{analogy_forward.1} parent=1 // pred_check
      _
    $region43: #{analogy_forward.1} parent=1 // pred_check_branch
      %580 = sbr.rel (0) target = $region45
    $region44: #{analogy_forward.1} parent=1 // pred_region
      // Predicated region
      $region46: #{analogy_forward.1} parent=44 // pred_check
        _
      $region47: #{analogy_forward.1} parent=44 // pred_check_branch
        %582 = sbr.rel (0) target = $region49
      $region48: #{analogy_forward.1} parent=44 // pred_region
        // Predicated region
        $region50: #{analogy_forward.1} parent=48 // pred_check
          _
        $region51: #{analogy_forward.1} parent=48 // pred_check_branch
          %584 = sbr.rel target = $region53
        $region52: #{analogy_forward.1} parent=48 // pred_region
          // Predicated region
          $region65: #{analogy_forward.1} parent=52 // pred_check
            _
          $region66: #{analogy_forward.1} parent=52 // pred_check_branch
            %599 = sbr.rel (0) target = $region68
          $region67: #{analogy_forward.1} parent=52 // pred_region
            loop: start=0, step=1, limit=1
            $region69: #{analogy_forward.1} parent=67 // loop_pre_header
              _
            $region70: #{analogy_forward.1} parent=67 // loop_header
              %s602 = sphi 0, %s606
              %p603 = scmp.ge.s32.totalorder %s602, 1
              %s607 = sphi [#allocation2], [#allocation2]
              %s608 = sphi %s10, %s10
            $region71: #{analogy_forward.1} parent=67 // loop_header_branch
              %605 = sbr.rel (%p603) target = $region75
            $region72: #{analogy_forward.1} parent=67 // loop_body
              %v609 = vld [vmem:[%s607] sm:$0x1]
              %610 = vst [vmem:[%s608] sm:$0x1] %v609
            $region73: #{analogy_forward.1} parent=67 // loop_footer
              %s606 = sadd.s32 1, %s602
            $region74: #{analogy_forward.1} parent=67 // loop_footer_branch
              %601 = sbr.rel target = $region70
            $region75: #{analogy_forward.1} parent=67 // loop_exit
              _
          $region68: #{analogy_forward.1} parent=52 // pred_fallthru
            _
        $region53: #{analogy_forward.1} parent=48 // pred_fallthru
          _
        // Predicated region
        $region54: #{analogy_forward.1} parent=48 // pred_check
          _
        $region55: #{analogy_forward.1} parent=48 // pred_check_branch
          %586 = sbr.rel (0) target = $region57
        $region56: #{analogy_forward.1} parent=48 // pred_region
          loop: start=0, step=1, limit=1
          $region58: #{analogy_forward.1} parent=56 // loop_pre_header
            _
          $region59: #{analogy_forward.1} parent=56 // loop_header
            %s589 = sphi 0, %s593
            %p590 = scmp.ge.s32.totalorder %s589, 1
            %s594 = sphi [#allocation2], [#allocation2]
            %s595 = sphi %s10, %s10
          $region60: #{analogy_forward.1} parent=56 // loop_header_branch
            %592 = sbr.rel (%p590) target = $region64
          $region61: #{analogy_forward.1} parent=56 // loop_body
            %v596 = vld [vmem:[%s594] sm:$0x1]
            %597 = vst [vmem:[%s595] sm:$0x1] %v596
          $region62: #{analogy_forward.1} parent=56 // loop_footer
            %s593 = sadd.s32 1, %s589
          $region63: #{analogy_forward.1} parent=56 // loop_footer_branch
            %588 = sbr.rel target = $region59
          $region64: #{analogy_forward.1} parent=56 // loop_exit
            _
        $region57: #{analogy_forward.1} parent=48 // pred_fallthru
          _
      $region49: #{analogy_forward.1} parent=44 // pred_fallthru
        _
      %611 = vnop
    $region45: #{analogy_forward.1} parent=1 // pred_fallthru
      _
    // Predicated region
    $region76: #{analogy_forward.1} parent=1 // pred_check
      _
    $region77: #{analogy_forward.1} parent=1 // pred_check_branch
      %613 = sbr.rel (0) target = $region79
    $region78: #{analogy_forward.1} parent=1 // pred_region
      // Predicated region
      $region80: #{analogy_forward.1} parent=78 // pred_check
        _
      $region81: #{analogy_forward.1} parent=78 // pred_check_branch
        %615 = sbr.rel (0) target = $region83
      $region82: #{analogy_forward.1} parent=78 // pred_region
        // Predicated region
        $region84: #{analogy_forward.1} parent=82 // pred_check
          _
        $region85: #{analogy_forward.1} parent=82 // pred_check_branch
          %617 = sbr.rel target = $region87
        $region86: #{analogy_forward.1} parent=82 // pred_region
          // Predicated region
          $region99: #{analogy_forward.1} parent=86 // pred_check
            _
          $region100: #{analogy_forward.1} parent=86 // pred_check_branch
            %632 = sbr.rel (0) target = $region102
          $region101: #{analogy_forward.1} parent=86 // pred_region
            loop: start=0, step=1, limit=1
            $region103: #{analogy_forward.1} parent=101 // loop_pre_header
              _
            $region104: #{analogy_forward.1} parent=101 // loop_header
              %s635 = sphi 0, %s639
              %p636 = scmp.ge.s32.totalorder %s635, 1
              %s640 = sphi [#allocation3], [#allocation3]
              %s641 = sphi %s11, %s11
            $region105: #{analogy_forward.1} parent=101 // loop_header_branch
              %638 = sbr.rel (%p636) target = $region109
            $region106: #{analogy_forward.1} parent=101 // loop_body
              %v642 = vld [vmem:[%s640] sm:$0x3]
              %643 = vst [vmem:[%s641] sm:$0x3] %v642
            $region107: #{analogy_forward.1} parent=101 // loop_footer
              %s639 = sadd.s32 1, %s635
            $region108: #{analogy_forward.1} parent=101 // loop_footer_branch
              %634 = sbr.rel target = $region104
            $region109: #{analogy_forward.1} parent=101 // loop_exit
              _
          $region102: #{analogy_forward.1} parent=86 // pred_fallthru
            _
        $region87: #{analogy_forward.1} parent=82 // pred_fallthru
          _
        // Predicated region
        $region88: #{analogy_forward.1} parent=82 // pred_check
          _
        $region89: #{analogy_forward.1} parent=82 // pred_check_branch
          %619 = sbr.rel (0) target = $region91
        $region90: #{analogy_forward.1} parent=82 // pred_region
          loop: start=0, step=1, limit=1
          $region92: #{analogy_forward.1} parent=90 // loop_pre_header
            _
          $region93: #{analogy_forward.1} parent=90 // loop_header
            %s622 = sphi 0, %s626
            %p623 = scmp.ge.s32.totalorder %s622, 1
            %s627 = sphi [#allocation3], [#allocation3]
            %s628 = sphi %s11, %s11
          $region94: #{analogy_forward.1} parent=90 // loop_header_branch
            %625 = sbr.rel (%p623) target = $region98
          $region95: #{analogy_forward.1} parent=90 // loop_body
            %v629 = vld [vmem:[%s627] sm:$0x3]
            %630 = vst [vmem:[%s628] sm:$0x3] %v629
          $region96: #{analogy_forward.1} parent=90 // loop_footer
            %s626 = sadd.s32 1, %s622
          $region97: #{analogy_forward.1} parent=90 // loop_footer_branch
            %621 = sbr.rel target = $region93
          $region98: #{analogy_forward.1} parent=90 // loop_exit
            _
        $region91: #{analogy_forward.1} parent=82 // pred_fallthru
          _
      $region83: #{analogy_forward.1} parent=78 // pred_fallthru
        _
      %644 = vnop
    $region79: #{analogy_forward.1} parent=1 // pred_fallthru
      _
    // Predicated region
    $region110: #{analogy_forward.1} parent=1 // pred_check
      _
    $region111: #{analogy_forward.1} parent=1 // pred_check_branch
      %646 = sbr.rel (0) target = $region113
    $region112: #{analogy_forward.1} parent=1 // pred_region
      _
    $region113: #{analogy_forward.1} parent=1 // pred_fallthru
      _
    // Predicated region
    $region114: #{analogy_forward.1} parent=1 // pred_check
      _
    $region115: #{analogy_forward.1} parent=1 // pred_check_branch
      %648 = sbr.rel (0) target = $region117
    $region116: #{analogy_forward.1} parent=1 // pred_region
      _
    $region117: #{analogy_forward.1} parent=1 // pred_fallthru
      _

</llo_original>
